<compile_context>
chip_gen: v6e
topology: v6e:2x2x1
jax: 0.10.0
libtpu: 0.0.40
codegen_flags: <defaults>
</compile_context>

<pallas_src>
import numpy as np
import jax
import jax.numpy as jnp
from jax import lax
from jax.experimental import pallas as pl
from jax.experimental.pallas import tpu as pltpu

# ---- static model dimensions -------------------------------------------------
IN_H = IN_W = 12            # Linear(40, 5) pins the input spatial size to 12x12
C1_IN, C1_OUT, K1 = 1, 5, 3
C2_IN, C2_OUT, K2 = 5, 10, 5
H1 = IN_H - K1 + 1          # 10  (conv1 output spatial)
P1 = H1 // 2 + 1            # 6   (maxpool k=2, s=2, pad=1, floor mode)
H2 = P1 - K2 + 1            # 2   (conv2 output spatial)
P2 = H2 // 2 + 1            # 2   (pool of a 2-wide dim is the identity)
FC_IN, FC_OUT = C2_OUT * P2 * P2, 5     # 40, 5

LANE = 128                  # lane width / minimum batch tile
MAX_TB = 1024               # per-step batch tile cap

# matmul row/col geometry (multiples of 8 so every in-kernel slice is aligned)
X_ROWS = 152                          # 144 pixels + ones row + 7 zero pad
Q_VALID = P1 * P1 * C1_OUT            # 180 flattened pooled conv1 features
Q_ROWS = 184                          # 180 -> multiple of 8 (row 180 carries 1.0)
N_MEMBERS = 4                         # 2x2 pool-window member positions
W1_ROWS = N_MEMBERS * Q_ROWS          # 736
Z2_VALID = H2 * H2 * C2_OUT           # 40
Z2_ROWS = 48                          # 40 features + ones row + zero pad


def _round_up(n, m):
    return (n + m - 1) // m * m


# ---- static index maps (numpy, built once at import) --------------------------
# Each matmul weight is materialized in the wrapper as values[MAP], where MAP is
# a static int32 map and `values` = concat(torch params, [1.0], [0.0]) sentinels.

def _pool_members(p, n_in):
    """Conv indices covered by pool window p (k=2, s=2, pad=1, floor mode),
    duplicated at the edges so there are always exactly 2 members."""
    lo, hi = max(2 * p - 1, 0), min(2 * p, n_in - 1)
    return (lo, hi)


def _build_map_conv1():
    n_w = C1_OUT * K1 * K1                        # 45
    one, zero = n_w + C1_OUT, n_w + C1_OUT + 1    # 50, 51
    M = np.full((W1_ROWS, X_ROWS), zero, np.int32)
    for mi in range(2):
        for mj in range(2):
            m = mi * 2 + mj
            for ph in range(P1):
                for pw in range(P1):
                    i = _pool_members(ph, H1)[mi]
                    j = _pool_members(pw, H1)[mj]
                    for c in range(C1_OUT):
                        r = m * Q_ROWS + (ph * P1 + pw) * C1_OUT + c
                        for di in range(K1):
                            for dj in range(K1):
                                M[r, (i + di) * IN_W + (j + dj)] = c * K1 * K1 + di * K1 + dj
                        M[r, IN_H * IN_W] = n_w + c          # conv1 bias column
            # row Q_VALID of every member block evaluates to 1 (bias carrier)
            M[m * Q_ROWS + Q_VALID, IN_H * IN_W] = one
    return M


def _build_map_conv2():
    n_w = C2_OUT * C2_IN * K2 * K2                # 1250
    one, zero = n_w + C2_OUT, n_w + C2_OUT + 1    # 1260, 1261
    M = np.full((Z2_ROWS, Q_ROWS), zero, np.int32)
    for oh in range(H2):
        for ow in range(H2):
            for oc in range(C2_OUT):
                r = (oh * H2 + ow) * C2_OUT + oc
                for ci in range(C2_IN):
                    for di in range(K2):
                        for dj in range(K2):
                            q = ((oh + di) * P1 + (ow + dj)) * C2_IN + ci
                            M[r, q] = ((oc * C2_IN + ci) * K2 + di) * K2 + dj
                M[r, Q_VALID] = n_w + oc                     # conv2 bias column
    M[Z2_VALID, Q_VALID] = one                               # ones row for fc bias
    return M


def _build_map_fc():
    n_w = FC_OUT * FC_IN                          # 200
    zero = n_w + FC_OUT                           # 205
    M = np.full((FC_OUT, Z2_ROWS), zero, np.int32)
    for k in range(FC_OUT):
        for oc in range(C2_OUT):
            for oh in range(H2):
                for ow in range(H2):
                    # z2 row order = (oh*2+ow)*10 + oc; torch flatten = oc*4 + oh*2 + ow
                    M[k, (oh * H2 + ow) * C2_OUT + oc] = k * FC_IN + oc * P2 * P2 + oh * P2 + ow
        M[k, Z2_VALID] = n_w + k                             # fc bias column
    return M


_MAP1 = _build_map_conv1()
_MAP2 = _build_map_conv2()
_MAP3 = _build_map_fc()


# ---- the Pallas kernel (one batch tile of TB samples per grid step) -----------
def cnn_kernel(x_ref, w1_ref, w2_ref, wfc_ref, o_ref):
    # x_ref   : (152, TB)  flattened image + ones row, batch on lanes
    # w1_ref  : (736, 152) conv1 at all 4 pool-member positions (+ b1 folded)
    # w2_ref  : (48, 184)  conv2 over flattened pooled features (+ b2 folded)
    # wfc_ref : (5, 48)    fc with torch-flatten column permutation (+ bf folded)
    # o_ref   : (5, TB)    log-probs, class on sublane, batch on lanes
    x = x_ref[...]

    # conv1 (+ bias) at every pool-window member position: one MXU matmul.
    y1 = jnp.dot(w1_ref[...], x, preferred_element_type=jnp.float32)      # (736, TB)

    # maxpool(2, s=2, pad=1) = elementwise max of 4 aligned member blocks; relu.
    pooled = jnp.maximum(
        jnp.maximum(y1[0 * Q_ROWS:1 * Q_ROWS], y1[1 * Q_ROWS:2 * Q_ROWS]),
        jnp.maximum(y1[2 * Q_ROWS:3 * Q_ROWS], y1[3 * Q_ROWS:4 * Q_ROWS]))
    z1 = jnp.maximum(pooled, 0.0)                                          # (184, TB)

    # conv2 (+ bias) + pool2(identity) + relu: one MXU matmul against the
    # flattened pooled features ("im2col" folded into the weight zero pattern).
    z2 = jnp.maximum(
        jnp.dot(w2_ref[...], z1, preferred_element_type=jnp.float32), 0.0)  # (48, TB)

    # fc (+ bias): z2 row 40 is relu(1) == 1, so the bias rides in column 40.
    logits = jnp.dot(wfc_ref[...], z2, preferred_element_type=jnp.float32)  # (5, TB)

    # log_softmax over the 5-row class (sublane) axis.
    m = jnp.max(logits, axis=0, keepdims=True)
    s = logits - m
    lse = jnp.log(jnp.sum(jnp.exp(s), axis=0, keepdims=True))
    o_ref[...] = s - lse


# ---- wrapper ------------------------------------------------------------------
@jax.jit
def cnn_forward(x_nchw, params):
    B = x_nchw.shape[0]
    b_lanes = _round_up(max(B, 1), LANE)
    # Keep the batch grid >= 2 steps when possible so ("parallel",) can shard
    # across both v7x TensorCores; cap the tile at MAX_TB.
    TB = min(MAX_TB, max(LANE, _round_up(b_lanes // 2, LANE)))
    B_pad = _round_up(b_lanes, TB)

    # input: NCHW -> (features, batch) with a ones row for the bias fold.
    x2 = x_nchw.astype(jnp.float32).reshape(B, IN_H * IN_W)                # (B, 144)
    x2 = jnp.concatenate(
        [x2, jnp.ones((B, 1), jnp.float32),
         jnp.zeros((B, X_ROWS - IN_H * IN_W - 1), jnp.float32)], axis=1)   # (B, 152)
    x_flat = jnp.pad(x2, ((0, B_pad - B), (0, 0))).T                       # (152, B_pad)

    # structured-sparse weights (tiny gathers, done once per call in XLA).
    one = jnp.ones((1,), jnp.float32)
    zero = jnp.zeros((1,), jnp.float32)
    v1 = jnp.concatenate([params["w1"].reshape(-1), params["b1"], one, zero])
    v2 = jnp.concatenate([params["w2"].reshape(-1), params["b2"], one, zero])
    v3 = jnp.concatenate([params["wf"].reshape(-1), params["bf"], zero])
    w1m = v1[_MAP1]          # (736, 152)
    w2f = v2[_MAP2]          # (48, 184)
    wfc = v3[_MAP3]          # (5, 48)

    out = pl.pallas_call(
        cnn_kernel,
        out_shape=jax.ShapeDtypeStruct((FC_OUT, B_pad), jnp.float32),
        grid_spec=pltpu.PrefetchScalarGridSpec(
            num_scalar_prefetch=0,
            grid=(B_pad // TB,),
            in_specs=[
                pl.BlockSpec((X_ROWS, TB), lambda b: (0, b)),
                pl.BlockSpec((W1_ROWS, X_ROWS), lambda b: (0, 0)),
                pl.BlockSpec((Z2_ROWS, Q_ROWS), lambda b: (0, 0)),
                pl.BlockSpec((FC_OUT, Z2_ROWS), lambda b: (0, 0)),
            ],
            out_specs=pl.BlockSpec((FC_OUT, TB), lambda b: (0, b)),
        ),
        compiler_params=pltpu.CompilerParams(
            dimension_semantics=("parallel",),
            vmem_limit_bytes=32 * 1024 * 1024),
    )(x_flat, w1m, w2f, wfc)

    return out[:, :B].T                                                    # (B, 5)


# ---- deterministic parameter init (PyTorch-default-style uniform bounds) -------
def make_params(key):
    ks = jax.random.split(key, 6)

    def init(k, shape, fan_in):
        bound = 1.0 / (fan_in ** 0.5)
        return jax.random.uniform(k, shape, jnp.float32, -bound, bound)

    return dict(
        w1=init(ks[0], (C1_OUT, C1_IN, K1, K1), C1_IN * K1 * K1),
        b1=init(ks[1], (C1_OUT,), C1_IN * K1 * K1),
        w2=init(ks[2], (C2_OUT, C2_IN, K2, K2), C2_IN * K2 * K2),
        b2=init(ks[3], (C2_OUT,), C2_IN * K2 * K2),
        wf=init(ks[4], (FC_OUT, FC_IN), FC_IN),
        bf=init(ks[5], (FC_OUT,), FC_IN),
    )


# ---- pure-JAX reference (for correctness check) --------------------------------
def cnn_reference(x_nchw, params):
    x = x_nchw.astype(jnp.float32)

    def conv(x, w, b):
        y = lax.conv_general_dilated(x, w, (1, 1), "VALID",
                                     dimension_numbers=("NCHW", "OIHW", "NCHW"))
        return y + b[None, :, None, None]

    def mp(x):
        return lax.reduce_window(x, -jnp.inf, lax.max, (1, 1, 2, 2), (1, 1, 2, 2),
                                 ((0, 0), (0, 0), (1, 1), (1, 1)))

    x = jnp.maximum(mp(conv(x, params["w1"], params["b1"])), 0.0)
    x = jnp.maximum(mp(conv(x, params["w2"], params["b2"])), 0.0)
    x = x.reshape(x.shape[0], -1)
    x = x @ params["wf"].T + params["bf"]
    return jax.nn.log_softmax(x, axis=-1)


if __name__ == "__main__":
    key = jax.random.PRNGKey(0)
    pkey, xkey = jax.random.split(key)
    params = make_params(pkey)
    x = jax.random.normal(xkey, (2, C1_IN, IN_H, IN_W), jnp.float32)   # batch=2, NCHW

    out = jax.block_until_ready(cnn_forward(x, params))
    ref = jax.block_until_ready(cnn_reference(x, params))

    assert out.shape == (2, FC_OUT), out.shape
    if not jnp.allclose(out, ref, atol=2e-3, rtol=2e-3):
        raise AssertionError(
            f"mismatch vs reference, max abs diff = {float(jnp.max(jnp.abs(out - ref)))}")
    print("KERNEL_OK")
</pallas_src>

<mosaic_0001>
module attributes {stable_mosaic.version = 11 : i64} {
  func.func @cnn_kernel(%arg0: i32, %arg1: memref<152x128xf32, #tpu.memory_space<vmem>>, %arg2: memref<736x152xf32, #tpu.memory_space<vmem>>, %arg3: memref<48x184xf32, #tpu.memory_space<vmem>>, %arg4: memref<5x48xf32, #tpu.memory_space<vmem>>, %arg5: memref<5x128xf32, #tpu.memory_space<vmem>>) attributes {dimension_semantics = [#tpu.dimension_semantics<parallel>], iteration_bounds = array<i64: 1>, scalar_prefetch = 0 : i64, scratch_operands = 0 : i64, tpu.core_type = #tpu.core_type<tc>, window_params = [{transform_indices = @transform_0, window_bounds = array<i64: 152, 128>}, {pipeline_mode = #tpu.pipeline_mode<synchronous>, transform_indices = @transform_1, window_bounds = array<i64: 736, 152>}, {pipeline_mode = #tpu.pipeline_mode<synchronous>, transform_indices = @transform_2, window_bounds = array<i64: 48, 184>}, {pipeline_mode = #tpu.pipeline_mode<synchronous>, transform_indices = @transform_3, window_bounds = array<i64: 5, 48>}, {transform_indices = @transform_4, window_bounds = array<i64: 5, 128>}]} {
    %c0 = arith.constant 0 : index
    %c0_0 = arith.constant 0 : index
    %0 = vector.load %arg1[%c0, %c0_0] : memref<152x128xf32, #tpu.memory_space<vmem>>, vector<152x128xf32>
    %c0_1 = arith.constant 0 : index
    %c0_2 = arith.constant 0 : index
    %1 = vector.load %arg2[%c0_1, %c0_2] : memref<736x152xf32, #tpu.memory_space<vmem>>, vector<736x152xf32>
    %cst = arith.constant dense<0.000000e+00> : vector<736x128xf32>
    %2 = tpu.matmul %1, %0, %cst {dimension_numbers = #tpu.dot_dimension_numbers<[1], [0], [0], [1], [0, 0, 1, 1], [], []>} : vector<736x152xf32>, vector<152x128xf32>, vector<736x128xf32> -> vector<736x128xf32>
    %3 = vector.extract_strided_slice %2 {offsets = [0, 0], sizes = [184, 128], strides = [1, 1]} : vector<736x128xf32> to vector<184x128xf32>
    %4 = vector.extract_strided_slice %2 {offsets = [184, 0], sizes = [184, 128], strides = [1, 1]} : vector<736x128xf32> to vector<184x128xf32>
    %5 = arith.maximumf %3, %4 : vector<184x128xf32>
    %6 = vector.extract_strided_slice %2 {offsets = [368, 0], sizes = [184, 128], strides = [1, 1]} : vector<736x128xf32> to vector<184x128xf32>
    %7 = vector.extract_strided_slice %2 {offsets = [552, 0], sizes = [184, 128], strides = [1, 1]} : vector<736x128xf32> to vector<184x128xf32>
    %8 = arith.maximumf %6, %7 : vector<184x128xf32>
    %9 = arith.maximumf %5, %8 : vector<184x128xf32>
    %cst_3 = arith.constant 0.000000e+00 : f32
    %10 = vector.broadcast %cst_3 : f32 to vector<184x128xf32>
    %11 = arith.maximumf %9, %10 : vector<184x128xf32>
    %c0_4 = arith.constant 0 : index
    %c0_5 = arith.constant 0 : index
    %12 = vector.load %arg3[%c0_4, %c0_5] : memref<48x184xf32, #tpu.memory_space<vmem>>, vector<48x184xf32>
    %cst_6 = arith.constant dense<0.000000e+00> : vector<48x128xf32>
    %13 = tpu.matmul %12, %11, %cst_6 {dimension_numbers = #tpu.dot_dimension_numbers<[1], [0], [0], [1], [0, 0, 1, 1], [], []>} : vector<48x184xf32>, vector<184x128xf32>, vector<48x128xf32> -> vector<48x128xf32>
    %cst_7 = arith.constant 0.000000e+00 : f32
    %14 = vector.broadcast %cst_7 : f32 to vector<48x128xf32>
    %15 = arith.maximumf %13, %14 : vector<48x128xf32>
    %c0_8 = arith.constant 0 : index
    %c0_9 = arith.constant 0 : index
    %16 = vector.load %arg4[%c0_8, %c0_9] : memref<5x48xf32, #tpu.memory_space<vmem>>, vector<5x48xf32>
    %cst_10 = arith.constant dense<0.000000e+00> : vector<5x128xf32>
    %17 = tpu.matmul %16, %15, %cst_10 {dimension_numbers = #tpu.dot_dimension_numbers<[1], [0], [0], [1], [0, 0, 1, 1], [], []>} : vector<5x48xf32>, vector<48x128xf32>, vector<5x128xf32> -> vector<5x128xf32>
    %cst_11 = arith.constant dense<0xFF800000> : vector<128xf32>
    %18 = vector.multi_reduction <maximumf>, %17, %cst_11 [0] : vector<5x128xf32> to vector<128xf32>
    %19 = vector.shape_cast %18 : vector<128xf32> to vector<1x128xf32>
    %20 = vector.broadcast %19 : vector<1x128xf32> to vector<5x128xf32>
    %21 = arith.subf %17, %20 : vector<5x128xf32>
    %22 = math.exp %21 : vector<5x128xf32>
    %cst_12 = arith.constant dense<0.000000e+00> : vector<128xf32>
    %23 = vector.multi_reduction <add>, %22, %cst_12 [0] : vector<5x128xf32> to vector<128xf32>
    %24 = vector.shape_cast %23 : vector<128xf32> to vector<1x128xf32>
    %25 = math.log %24 : vector<1x128xf32>
    %26 = vector.broadcast %25 : vector<1x128xf32> to vector<5x128xf32>
    %27 = arith.subf %21, %26 : vector<5x128xf32>
    %c0_13 = arith.constant 0 : index
    %c0_14 = arith.constant 0 : index
    %28 = vector.load %arg5[%c0_13, %c0_14] : memref<5x128xf32, #tpu.memory_space<vmem>>, vector<5x128xf32>
    tpu.vector_store %arg5[%c0_13, %c0_14], %27 {strides = array<i32>} : memref<5x128xf32, #tpu.memory_space<vmem>>, vector<5x128xf32>,
    return
  }
  func.func @transform_0(%arg0: i32) -> (i32, i32) {
    %c0_i32 = arith.constant 0 : i32
    %c0_i32_0 = arith.constant 0 : i32
    return %c0_i32, %arg0 : i32, i32
  }
  func.func @transform_1(%arg0: i32) -> (i32, i32) {
    %c0_i32 = arith.constant 0 : i32
    %c0_i32_0 = arith.constant 0 : i32
    %c0_i32_1 = arith.constant 0 : i32
    return %c0_i32, %c0_i32_0 : i32, i32
  }
  func.func @transform_2(%arg0: i32) -> (i32, i32) {
    %c0_i32 = arith.constant 0 : i32
    %c0_i32_0 = arith.constant 0 : i32
    %c0_i32_1 = arith.constant 0 : i32
    return %c0_i32, %c0_i32_0 : i32, i32
  }
  func.func @transform_3(%arg0: i32) -> (i32, i32) {
    %c0_i32 = arith.constant 0 : i32
    %c0_i32_0 = arith.constant 0 : i32
    %c0_i32_1 = arith.constant 0 : i32
    return %c0_i32, %c0_i32_0 : i32, i32
  }
  func.func @transform_4(%arg0: i32) -> (i32, i32) {
    %c0_i32 = arith.constant 0 : i32
    %c0_i32_0 = arith.constant 0 : i32
    return %c0_i32, %arg0 : i32, i32
  }
}

</mosaic_0001>

<llo_original>
// kernel: cnn_forward.1
$region0: #{cnn_forward.1}
  #allocation0 [shape = 'u32[]', space=smem, size = 0x4, offset = 0x4, fixed_abs, tag = 'smem constant byte address 0x4 - core index']
  #allocation1 [shape = 'u32[144,128]{1,0:T(1,128)}', space=vmem, size = 0x12000, scoped, tag = 'internal scratch']
  %s0 = inlined_call_operand.vmem [shape: f32[152,128], index: 0, kind: input, shape index: {}]
  %s1 = inlined_call_operand.vmem [shape: f32[736,152], index: 1, kind: input, shape index: {}]
  %s2 = inlined_call_operand.vmem [shape: f32[48,184], index: 2, kind: input, shape index: {}]
  %s3 = inlined_call_operand.vmem [shape: f32[5,48], index: 3, kind: input, shape index: {}]
  %s4 = inlined_call_operand.vmem [shape: f32[5,128], index: 4, kind: output, shape index: {}]
  %s5 = sld [smem:[#allocation0]]
  $region26: #{cnn_forward.1} parent=0
    _
  %s7 = ssub.s32 1, %s5
  %s8 = scalar_select 0, %s7, %s5
  // Predicated region
  $region2: #{cnn_forward.1} parent=0 // pred_check
    _
  $region3: #{cnn_forward.1} parent=0 // pred_check_branch
    %10 = sbr.rel (0) target = $region5
  $region4: #{cnn_forward.1} parent=0 // pred_region
    _
  $region5: #{cnn_forward.1} parent=0 // pred_fallthru
    _
  // Predicated region
  $region6: #{cnn_forward.1} parent=0 // pred_check
    _
  $region7: #{cnn_forward.1} parent=0 // pred_check_branch
    %12 = sbr.rel (0) target = $region9
  $region8: #{cnn_forward.1} parent=0 // pred_region
    _
  $region9: #{cnn_forward.1} parent=0 // pred_fallthru
    _
  // Predicated region
  $region10: #{cnn_forward.1} parent=0 // pred_check
    _
  $region11: #{cnn_forward.1} parent=0 // pred_check_branch
    %14 = sbr.rel (0) target = $region13
  $region12: #{cnn_forward.1} parent=0 // pred_region
    _
  $region13: #{cnn_forward.1} parent=0 // pred_fallthru
    _
  // Predicated region
  $region14: #{cnn_forward.1} parent=0 // pred_check
    _
  $region15: #{cnn_forward.1} parent=0 // pred_check_branch
    %16 = sbr.rel (0) target = $region17
  $region16: #{cnn_forward.1} parent=0 // pred_region
    _
  $region17: #{cnn_forward.1} parent=0 // pred_fallthru
    _
  %v17 = vld [vmem:[%s0] sm:$0xff]
  %v18 = vld [vmem:[%s0 + $0x8] sm:$0xff]
  %v19 = vld [vmem:[%s0 + $0x10] sm:$0xff]
  %v20 = vld [vmem:[%s0 + $0x18] sm:$0xff]
  %v21 = vld [vmem:[%s0 + $0x20] sm:$0xff]
  %v22 = vld [vmem:[%s0 + $0x28] sm:$0xff]
  %v23 = vld [vmem:[%s0 + $0x30] sm:$0xff]
  %v24 = vld [vmem:[%s0 + $0x38] sm:$0xff]
  %v25 = vld [vmem:[%s0 + $0x40] sm:$0xff]
  %v26 = vld [vmem:[%s0 + $0x48] sm:$0xff]
  %v27 = vld [vmem:[%s0 + $0x50] sm:$0xff]
  %v28 = vld [vmem:[%s0 + $0x58] sm:$0xff]
  %v29 = vld [vmem:[%s0 + $0x60] sm:$0xff]
  %v30 = vld [vmem:[%s0 + $0x68] sm:$0xff]
  %v31 = vld [vmem:[%s0 + $0x70] sm:$0xff]
  %v32 = vld [vmem:[%s0 + $0x78] sm:$0xff]
  %v33 = vld [vmem:[%s0 + $0x80] sm:$0xff]
  %v34 = vld [vmem:[%s0 + $0x88] sm:$0xff]
  %v35 = vld [vmem:[%s0 + $0x90] sm:$0xff]
  %v36 = vld [vmem:[%s1] sm:$0xff]
  %v37 = vld [vmem:[%s1 + $0x8] sm:$0xff]
  %v38 = vld [vmem:[%s1 + $0x10] sm:$0xff]
  %v39 = vld [vmem:[%s1 + $0x18] sm:$0xff]
  %v40 = vld [vmem:[%s1 + $0x20] sm:$0xff]
  %v41 = vld [vmem:[%s1 + $0x28] sm:$0xff]
  %v42 = vld [vmem:[%s1 + $0x30] sm:$0xff]
  %v43 = vld [vmem:[%s1 + $0x38] sm:$0xff]
  %v44 = vld [vmem:[%s1 + $0x40] sm:$0xff]
  %v45 = vld [vmem:[%s1 + $0x48] sm:$0xff]
  %v46 = vld [vmem:[%s1 + $0x50] sm:$0xff]
  %v47 = vld [vmem:[%s1 + $0x58] sm:$0xff]
  %v48 = vld [vmem:[%s1 + $0x60] sm:$0xff]
  %v49 = vld [vmem:[%s1 + $0x68] sm:$0xff]
  %v50 = vld [vmem:[%s1 + $0x70] sm:$0xff]
  %v51 = vld [vmem:[%s1 + $0x78] sm:$0xff]
  %v52 = vld [vmem:[%s1 + $0x80] sm:$0xff]
  %v53 = vld [vmem:[%s1 + $0x88] sm:$0xff]
  %v54 = vld [vmem:[%s1 + $0x90] sm:$0xff]
  %v55 = vld [vmem:[%s1 + $0x98] sm:$0xff]
  %v56 = vld [vmem:[%s1 + $0xa0] sm:$0xff]
  %v57 = vld [vmem:[%s1 + $0xa8] sm:$0xff]
  %v58 = vld [vmem:[%s1 + $0xb0] sm:$0xff]
  %v59 = vld [vmem:[%s1 + $0xb8] sm:$0xff]
  %v60 = vld [vmem:[%s1 + $0xc0] sm:$0xff]
  %v61 = vld [vmem:[%s1 + $0xc8] sm:$0xff]
  %v62 = vld [vmem:[%s1 + $0xd0] sm:$0xff]
  %v63 = vld [vmem:[%s1 + $0xd8] sm:$0xff]
  %v64 = vld [vmem:[%s1 + $0xe0] sm:$0xff]
  %v65 = vld [vmem:[%s1 + $0xe8] sm:$0xff]
  %v66 = vld [vmem:[%s1 + $0xf0] sm:$0xff]
  %v67 = vld [vmem:[%s1 + $0xf8] sm:$0xff]
  %v68 = vld [vmem:[%s1 + $0x100] sm:$0xff]
  %v69 = vld [vmem:[%s1 + $0x108] sm:$0xff]
  %v70 = vld [vmem:[%s1 + $0x110] sm:$0xff]
  %v71 = vld [vmem:[%s1 + $0x118] sm:$0xff]
  %v72 = vld [vmem:[%s1 + $0x120] sm:$0xff]
  %v73 = vld [vmem:[%s1 + $0x128] sm:$0xff]
  %v74 = vld [vmem:[%s1 + $0x130] sm:$0xff]
  %v75 = vld [vmem:[%s1 + $0x138] sm:$0xff]
  %v76 = vld [vmem:[%s1 + $0x140] sm:$0xff]
  %v77 = vld [vmem:[%s1 + $0x148] sm:$0xff]
  %v78 = vld [vmem:[%s1 + $0x150] sm:$0xff]
  %v79 = vld [vmem:[%s1 + $0x158] sm:$0xff]
  %v80 = vld [vmem:[%s1 + $0x160] sm:$0xff]
  %v81 = vld [vmem:[%s1 + $0x168] sm:$0xff]
  %v82 = vld [vmem:[%s1 + $0x170] sm:$0xff]
  %v83 = vld [vmem:[%s1 + $0x178] sm:$0xff]
  %v84 = vld [vmem:[%s1 + $0x180] sm:$0xff]
  %v85 = vld [vmem:[%s1 + $0x188] sm:$0xff]
  %v86 = vld [vmem:[%s1 + $0x190] sm:$0xff]
  %v87 = vld [vmem:[%s1 + $0x198] sm:$0xff]
  %v88 = vld [vmem:[%s1 + $0x1a0] sm:$0xff]
  %v89 = vld [vmem:[%s1 + $0x1a8] sm:$0xff]
  %v90 = vld [vmem:[%s1 + $0x1b0] sm:$0xff]
  %v91 = vld [vmem:[%s1 + $0x1b8] sm:$0xff]
  %v92 = vld [vmem:[%s1 + $0x1c0] sm:$0xff]
  %v93 = vld [vmem:[%s1 + $0x1c8] sm:$0xff]
  %v94 = vld [vmem:[%s1 + $0x1d0] sm:$0xff]
  %v95 = vld [vmem:[%s1 + $0x1d8] sm:$0xff]
  %v96 = vld [vmem:[%s1 + $0x1e0] sm:$0xff]
  %v97 = vld [vmem:[%s1 + $0x1e8] sm:$0xff]
  %v98 = vld [vmem:[%s1 + $0x1f0] sm:$0xff]
  %v99 = vld [vmem:[%s1 + $0x1f8] sm:$0xff]
  %v100 = vld [vmem:[%s1 + $0x200] sm:$0xff]
  %v101 = vld [vmem:[%s1 + $0x208] sm:$0xff]
  %v102 = vld [vmem:[%s1 + $0x210] sm:$0xff]
  %v103 = vld [vmem:[%s1 + $0x218] sm:$0xff]
  %v104 = vld [vmem:[%s1 + $0x220] sm:$0xff]
  %v105 = vld [vmem:[%s1 + $0x228] sm:$0xff]
  %v106 = vld [vmem:[%s1 + $0x230] sm:$0xff]
  %v107 = vld [vmem:[%s1 + $0x238] sm:$0xff]
  %v108 = vld [vmem:[%s1 + $0x240] sm:$0xff]
  %v109 = vld [vmem:[%s1 + $0x248] sm:$0xff]
  %v110 = vld [vmem:[%s1 + $0x250] sm:$0xff]
  %v111 = vld [vmem:[%s1 + $0x258] sm:$0xff]
  %v112 = vld [vmem:[%s1 + $0x260] sm:$0xff]
  %v113 = vld [vmem:[%s1 + $0x268] sm:$0xff]
  %v114 = vld [vmem:[%s1 + $0x270] sm:$0xff]
  %v115 = vld [vmem:[%s1 + $0x278] sm:$0xff]
  %v116 = vld [vmem:[%s1 + $0x280] sm:$0xff]
  %v117 = vld [vmem:[%s1 + $0x288] sm:$0xff]
  %v118 = vld [vmem:[%s1 + $0x290] sm:$0xff]
  %v119 = vld [vmem:[%s1 + $0x298] sm:$0xff]
  %v120 = vld [vmem:[%s1 + $0x2a0] sm:$0xff]
  %v121 = vld [vmem:[%s1 + $0x2a8] sm:$0xff]
  %v122 = vld [vmem:[%s1 + $0x2b0] sm:$0xff]
  %v123 = vld [vmem:[%s1 + $0x2b8] sm:$0xff]
  %v124 = vld [vmem:[%s1 + $0x2c0] sm:$0xff]
  %v125 = vld [vmem:[%s1 + $0x2c8] sm:$0xff]
  %v126 = vld [vmem:[%s1 + $0x2d0] sm:$0xff]
  %v127 = vld [vmem:[%s1 + $0x2d8] sm:$0xff]
  %v128 = vld [vmem:[%s1 + $0x2e0] sm:$0xff]
  %v129 = vld [vmem:[%s1 + $0x2e8] sm:$0xff]
  %v130 = vld [vmem:[%s1 + $0x2f0] sm:$0xff]
  %v131 = vld [vmem:[%s1 + $0x2f8] sm:$0xff]
  %v132 = vld [vmem:[%s1 + $0x300] sm:$0xff]
  %v133 = vld [vmem:[%s1 + $0x308] sm:$0xff]
  %v134 = vld [vmem:[%s1 + $0x310] sm:$0xff]
  %v135 = vld [vmem:[%s1 + $0x318] sm:$0xff]
  %v136 = vld [vmem:[%s1 + $0x320] sm:$0xff]
  %v137 = vld [vmem:[%s1 + $0x328] sm:$0xff]
  %v138 = vld [vmem:[%s1 + $0x330] sm:$0xff]
  %v139 = vld [vmem:[%s1 + $0x338] sm:$0xff]
  %v140 = vld [vmem:[%s1 + $0x340] sm:$0xff]
  %v141 = vld [vmem:[%s1 + $0x348] sm:$0xff]
  %v142 = vld [vmem:[%s1 + $0x350] sm:$0xff]
  %v143 = vld [vmem:[%s1 + $0x358] sm:$0xff]
  %v144 = vld [vmem:[%s1 + $0x360] sm:$0xff]
  %v145 = vld [vmem:[%s1 + $0x368] sm:$0xff]
  %v146 = vld [vmem:[%s1 + $0x370] sm:$0xff]
  %v147 = vld [vmem:[%s1 + $0x378] sm:$0xff]
  %v148 = vld [vmem:[%s1 + $0x380] sm:$0xff]
  %v149 = vld [vmem:[%s1 + $0x388] sm:$0xff]
  %v150 = vld [vmem:[%s1 + $0x390] sm:$0xff]
  %v151 = vld [vmem:[%s1 + $0x398] sm:$0xff]
  %v152 = vld [vmem:[%s1 + $0x3a0] sm:$0xff]
  %v153 = vld [vmem:[%s1 + $0x3a8] sm:$0xff]
  %v154 = vld [vmem:[%s1 + $0x3b0] sm:$0xff]
  %v155 = vld [vmem:[%s1 + $0x3b8] sm:$0xff]
  %v156 = vld [vmem:[%s1 + $0x3c0] sm:$0xff]
  %v157 = vld [vmem:[%s1 + $0x3c8] sm:$0xff]
  %v158 = vld [vmem:[%s1 + $0x3d0] sm:$0xff]
  %v159 = vld [vmem:[%s1 + $0x3d8] sm:$0xff]
  %v160 = vld [vmem:[%s1 + $0x3e0] sm:$0xff]
  %v161 = vld [vmem:[%s1 + $0x3e8] sm:$0xff]
  %v162 = vld [vmem:[%s1 + $0x3f0] sm:$0xff]
  %v163 = vld [vmem:[%s1 + $0x3f8] sm:$0xff]
  %v164 = vld [vmem:[%s1 + $0x400] sm:$0xff]
  %v165 = vld [vmem:[%s1 + $0x408] sm:$0xff]
  %v166 = vld [vmem:[%s1 + $0x410] sm:$0xff]
  %v167 = vld [vmem:[%s1 + $0x418] sm:$0xff]
  %v168 = vld [vmem:[%s1 + $0x420] sm:$0xff]
  %v169 = vld [vmem:[%s1 + $0x428] sm:$0xff]
  %v170 = vld [vmem:[%s1 + $0x430] sm:$0xff]
  %v171 = vld [vmem:[%s1 + $0x438] sm:$0xff]
  %v172 = vld [vmem:[%s1 + $0x440] sm:$0xff]
  %v173 = vld [vmem:[%s1 + $0x448] sm:$0xff]
  %v174 = vld [vmem:[%s1 + $0x450] sm:$0xff]
  %v175 = vld [vmem:[%s1 + $0x458] sm:$0xff]
  %v176 = vld [vmem:[%s1 + $0x460] sm:$0xff]
  %v177 = vld [vmem:[%s1 + $0x468] sm:$0xff]
  %v178 = vld [vmem:[%s1 + $0x470] sm:$0xff]
  %v179 = vld [vmem:[%s1 + $0x478] sm:$0xff]
  %v180 = vld [vmem:[%s1 + $0x480] sm:$0xff]
  %v181 = vld [vmem:[%s1 + $0x488] sm:$0xff]
  %v182 = vld [vmem:[%s1 + $0x490] sm:$0xff]
  %v183 = vld [vmem:[%s1 + $0x498] sm:$0xff]
  %v184 = vld [vmem:[%s1 + $0x4a0] sm:$0xff]
  %v185 = vld [vmem:[%s1 + $0x4a8] sm:$0xff]
  %v186 = vld [vmem:[%s1 + $0x4b0] sm:$0xff]
  %v187 = vld [vmem:[%s1 + $0x4b8] sm:$0xff]
  %v188 = vld [vmem:[%s1 + $0x4c0] sm:$0xff]
  %v189 = vld [vmem:[%s1 + $0x4c8] sm:$0xff]
  %v190 = vld [vmem:[%s1 + $0x4d0] sm:$0xff]
  %v191 = vld [vmem:[%s1 + $0x4d8] sm:$0xff]
  %v192 = vld [vmem:[%s1 + $0x4e0] sm:$0xff]
  %v193 = vld [vmem:[%s1 + $0x4e8] sm:$0xff]
  %v194 = vld [vmem:[%s1 + $0x4f0] sm:$0xff]
  %v195 = vld [vmem:[%s1 + $0x4f8] sm:$0xff]
  %v196 = vld [vmem:[%s1 + $0x500] sm:$0xff]
  %v197 = vld [vmem:[%s1 + $0x508] sm:$0xff]
  %v198 = vld [vmem:[%s1 + $0x510] sm:$0xff]
  %v199 = vld [vmem:[%s1 + $0x518] sm:$0xff]
  %v200 = vld [vmem:[%s1 + $0x520] sm:$0xff]
  %v201 = vld [vmem:[%s1 + $0x528] sm:$0xff]
  %v202 = vld [vmem:[%s1 + $0x530] sm:$0xff]
  %v203 = vld [vmem:[%s1 + $0x538] sm:$0xff]
  %v204 = vld [vmem:[%s1 + $0x540] sm:$0xff]
  %v205 = vld [vmem:[%s1 + $0x548] sm:$0xff]
  %v206 = vld [vmem:[%s1 + $0x550] sm:$0xff]
  %v207 = vld [vmem:[%s1 + $0x558] sm:$0xff]
  %v208 = vld [vmem:[%s1 + $0x560] sm:$0xff]
  %v209 = vld [vmem:[%s1 + $0x568] sm:$0xff]
  %v210 = vld [vmem:[%s1 + $0x570] sm:$0xff]
  %v211 = vld [vmem:[%s1 + $0x578] sm:$0xff]
  %v212 = vld [vmem:[%s1 + $0x580] sm:$0xff]
  %v213 = vld [vmem:[%s1 + $0x588] sm:$0xff]
  %v214 = vld [vmem:[%s1 + $0x590] sm:$0xff]
  %v215 = vld [vmem:[%s1 + $0x598] sm:$0xff]
  %v216 = vld [vmem:[%s1 + $0x5a0] sm:$0xff]
  %v217 = vld [vmem:[%s1 + $0x5a8] sm:$0xff]
  %v218 = vld [vmem:[%s1 + $0x5b0] sm:$0xff]
  %v219 = vld [vmem:[%s1 + $0x5b8] sm:$0xff]
  %vm220 = vcmask 195584
  %v222 = vsel %vm220, %v37, 0
  %v225 = vsel %vm220, %v39, 0
  %v228 = vsel %vm220, %v41, 0
  %v231 = vsel %vm220, %v43, 0
  %v234 = vsel %vm220, %v45, 0
  %v237 = vsel %vm220, %v47, 0
  %v240 = vsel %vm220, %v49, 0
  %v243 = vsel %vm220, %v51, 0
  %v246 = vsel %vm220, %v53, 0
  %v249 = vsel %vm220, %v55, 0
  %v252 = vsel %vm220, %v57, 0
  %v255 = vsel %vm220, %v59, 0
  %v258 = vsel %vm220, %v61, 0
  %v261 = vsel %vm220, %v63, 0
  %v264 = vsel %vm220, %v65, 0
  %v267 = vsel %vm220, %v67, 0
  %v270 = vsel %vm220, %v69, 0
  %v273 = vsel %vm220, %v71, 0
  %v276 = vsel %vm220, %v73, 0
  %v279 = vsel %vm220, %v75, 0
  %v282 = vsel %vm220, %v77, 0
  %v285 = vsel %vm220, %v79, 0
  %v288 = vsel %vm220, %v81, 0
  %v291 = vsel %vm220, %v83, 0
  %v294 = vsel %vm220, %v85, 0
  %v297 = vsel %vm220, %v87, 0
  %v300 = vsel %vm220, %v89, 0
  %v303 = vsel %vm220, %v91, 0
  %v306 = vsel %vm220, %v93, 0
  %v309 = vsel %vm220, %v95, 0
  %v312 = vsel %vm220, %v97, 0
  %v315 = vsel %vm220, %v99, 0
  %v318 = vsel %vm220, %v101, 0
  %v321 = vsel %vm220, %v103, 0
  %v324 = vsel %vm220, %v105, 0
  %v327 = vsel %vm220, %v107, 0
  %v330 = vsel %vm220, %v109, 0
  %v333 = vsel %vm220, %v111, 0
  %v336 = vsel %vm220, %v113, 0
  %v339 = vsel %vm220, %v115, 0
  %v342 = vsel %vm220, %v117, 0
  %v345 = vsel %vm220, %v119, 0
  %v348 = vsel %vm220, %v121, 0
  %v351 = vsel %vm220, %v123, 0
  %v354 = vsel %vm220, %v125, 0
  %v357 = vsel %vm220, %v127, 0
  %v360 = vsel %vm220, %v129, 0
  %v363 = vsel %vm220, %v131, 0
  %v366 = vsel %vm220, %v133, 0
  %v369 = vsel %vm220, %v135, 0
  %v372 = vsel %vm220, %v137, 0
  %v375 = vsel %vm220, %v139, 0
  %v378 = vsel %vm220, %v141, 0
  %v381 = vsel %vm220, %v143, 0
  %v384 = vsel %vm220, %v145, 0
  %v387 = vsel %vm220, %v147, 0
  %v390 = vsel %vm220, %v149, 0
  %v393 = vsel %vm220, %v151, 0
  %v396 = vsel %vm220, %v153, 0
  %v399 = vsel %vm220, %v155, 0
  %v402 = vsel %vm220, %v157, 0
  %v405 = vsel %vm220, %v159, 0
  %v408 = vsel %vm220, %v161, 0
  %v411 = vsel %vm220, %v163, 0
  %v414 = vsel %vm220, %v165, 0
  %v417 = vsel %vm220, %v167, 0
  %v420 = vsel %vm220, %v169, 0
  %v423 = vsel %vm220, %v171, 0
  %v426 = vsel %vm220, %v173, 0
  %v429 = vsel %vm220, %v175, 0
  %v432 = vsel %vm220, %v177, 0
  %v435 = vsel %vm220, %v179, 0
  %v438 = vsel %vm220, %v181, 0
  %v441 = vsel %vm220, %v183, 0
  %v444 = vsel %vm220, %v185, 0
  %v447 = vsel %vm220, %v187, 0
  %v450 = vsel %vm220, %v189, 0
  %v453 = vsel %vm220, %v191, 0
  %v456 = vsel %vm220, %v193, 0
  %v459 = vsel %vm220, %v195, 0
  %v462 = vsel %vm220, %v197, 0
  %v465 = vsel %vm220, %v199, 0
  %v468 = vsel %vm220, %v201, 0
  %v471 = vsel %vm220, %v203, 0
  %v474 = vsel %vm220, %v205, 0
  %v477 = vsel %vm220, %v207, 0
  %v480 = vsel %vm220, %v209, 0
  %v483 = vsel %vm220, %v211, 0
  %v486 = vsel %vm220, %v213, 0
  %v489 = vsel %vm220, %v215, 0
  %v492 = vsel %vm220, %v217, 0
  %v495 = vsel %vm220, %v219, 0
  %497 = vmatprep.subr.mxu0 0.0
  %498 = vmatpush1.msra.mxu0 %v32
  %499 = vmatprep.subr.mxu0 0.0
  %500 = vmatpush1.msra.mxu0 %v31
  %501 = vmatprep.subr.mxu0 0.0
  %502 = vmatpush1.msra.mxu0 %v30
  %503 = vmatprep.subr.mxu0 0.0
  %504 = vmatpush1.msra.mxu0 %v29
  %505 = vmatprep.subr.mxu0 0.0
  %506 = vmatpush1.msra.mxu0 %v28
  %507 = vmatprep.subr.mxu0 0.0
  %508 = vmatpush1.msra.mxu0 %v27
  %509 = vmatprep.subr.mxu0 0.0
  %510 = vmatpush1.msra.mxu0 %v26
  %511 = vmatprep.subr.mxu0 0.0
  %512 = vmatpush1.msra.mxu0 %v25
  %513 = vmatprep.subr.mxu0 0.0
  %514 = vmatpush1.msra.mxu0 %v24
  %515 = vmatprep.subr.mxu0 0.0
  %516 = vmatpush1.msra.mxu0 %v23
  %517 = vmatprep.subr.mxu0 0.0
  %518 = vmatpush1.msra.mxu0 %v22
  %519 = vmatprep.subr.mxu0 0.0
  %520 = vmatpush1.msra.mxu0 %v21
  %521 = vmatprep.subr.mxu0 0.0
  %522 = vmatpush1.msra.mxu0 %v20
  %523 = vmatprep.subr.mxu0 0.0
  %524 = vmatpush1.msra.mxu0 %v19
  %525 = vmatprep.subr.mxu0 0.0
  %526 = vmatpush1.msra.mxu0 %v18
  %527 = vmatprep.subr.mxu0 0.0
  %528 = vmatpush1.msra.mxu0 %v17
  %529 = vmatprep.subr.mxu0 0.0
  %530 = vmatpush2.msra.mxu0 0.0
  %531 = vmatprep.subr.mxu0 0.0
  %532 = vmatpush2.msra.mxu0 0.0
  %533 = vmatprep.subr.mxu0 0.0
  %534 = vmatpush2.msra.mxu0 0.0
  %535 = vmatprep.subr.mxu0 0.0
  %536 = vmatpush2.msra.mxu0 0.0
  %537 = vmatprep.subr.mxu0 0.0
  %538 = vmatpush2.msra.mxu0 0.0
  %539 = vmatprep.subr.mxu0 0.0
  %540 = vmatpush2.msra.mxu0 0.0
  %541 = vmatprep.subr.mxu0 0.0
  %542 = vmatpush2.msra.mxu0 0.0
  %543 = vmatprep.subr.mxu0 0.0
  %544 = vmatpush2.msra.mxu0 0.0
  %545 = vmatprep.subr.mxu0 0.0
  %546 = vmatpush2.msra.mxu0 0.0
  %547 = vmatprep.subr.mxu0 0.0
  %548 = vmatpush2.msra.mxu0 0.0
  %549 = vmatprep.subr.mxu0 0.0
  %550 = vmatpush2.msra.mxu0 0.0
  %551 = vmatprep.subr.mxu0 0.0
  %552 = vmatpush2.msra.mxu0 0.0
  %553 = vmatprep.subr.mxu0 0.0
  %554 = vmatpush2.msra.mxu0 0.0
  %555 = vmatprep.subr.mxu0 0.0
  %556 = vmatpush2.msra.mxu0 %v35
  %557 = vmatprep.subr.mxu0 0.0
  %558 = vmatpush2.msra.mxu0 %v34
  %559 = vmatprep.subr.mxu0 0.0
  %560 = vmatpush2.msra.mxu0 %v33
  %561 = vmatprep.mubr.f32.mxu0 %v222
  %562 = vmatmul.mubr.f32.gmra.mxu0 %v36
  %v563 = vpop.f32.mrf.mxu0
  %v564 = vadd.f32 0.0, %v563
  %v565 = vpop.f32.mrf.mxu0
  %566 = vmatprep.mubr.f32.mxu0 %v225
  %567 = vmatmul.mubr.f32.gmra.mxu0 %v38
  %v568 = vpop.f32.mrf.mxu0
  %v569 = vadd.f32 0.0, %v568
  %v570 = vpop.f32.mrf.mxu0
  %571 = vmatprep.mubr.f32.mxu0 %v228
  %572 = vmatmul.mubr.f32.gmra.mxu0 %v40
  %v573 = vpop.f32.mrf.mxu0
  %v574 = vadd.f32 0.0, %v573
  %v575 = vpop.f32.mrf.mxu0
  %576 = vmatprep.mubr.f32.mxu0 %v231
  %577 = vmatmul.mubr.f32.gmra.mxu0 %v42
  %v578 = vpop.f32.mrf.mxu0
  %v579 = vadd.f32 0.0, %v578
  %v580 = vpop.f32.mrf.mxu0
  %581 = vmatprep.mubr.f32.mxu0 %v234
  %582 = vmatmul.mubr.f32.gmra.mxu0 %v44
  %v583 = vpop.f32.mrf.mxu0
  %v584 = vadd.f32 0.0, %v583
  %v585 = vpop.f32.mrf.mxu0
  %586 = vmatprep.mubr.f32.mxu0 %v237
  %587 = vmatmul.mubr.f32.gmra.mxu0 %v46
  %v588 = vpop.f32.mrf.mxu0
  %v589 = vadd.f32 0.0, %v588
  %v590 = vpop.f32.mrf.mxu0
  %591 = vmatprep.mubr.f32.mxu0 %v240
  %592 = vmatmul.mubr.f32.gmra.mxu0 %v48
  %v593 = vpop.f32.mrf.mxu0
  %v594 = vadd.f32 0.0, %v593
  %v595 = vpop.f32.mrf.mxu0
  %596 = vmatprep.mubr.f32.mxu0 %v243
  %597 = vmatmul.mubr.f32.gmra.mxu0 %v50
  %v598 = vpop.f32.mrf.mxu0
  %v599 = vadd.f32 0.0, %v598
  %v600 = vpop.f32.mrf.mxu0
  %601 = vmatprep.mubr.f32.mxu0 %v246
  %602 = vmatmul.mubr.f32.gmra.mxu0 %v52
  %v603 = vpop.f32.mrf.mxu0
  %v604 = vadd.f32 0.0, %v603
  %v605 = vpop.f32.mrf.mxu0
  %606 = vmatprep.mubr.f32.mxu0 %v249
  %607 = vmatmul.mubr.f32.gmra.mxu0 %v54
  %v608 = vpop.f32.mrf.mxu0
  %v609 = vadd.f32 0.0, %v608
  %v610 = vpop.f32.mrf.mxu0
  %611 = vmatprep.mubr.f32.mxu0 %v252
  %612 = vmatmul.mubr.f32.gmra.mxu0 %v56
  %v613 = vpop.f32.mrf.mxu0
  %v614 = vadd.f32 0.0, %v613
  %v615 = vpop.f32.mrf.mxu0
  %616 = vmatprep.mubr.f32.mxu0 %v255
  %617 = vmatmul.mubr.f32.gmra.mxu0 %v58
  %v618 = vpop.f32.mrf.mxu0
  %v619 = vadd.f32 0.0, %v618
  %v620 = vpop.f32.mrf.mxu0
  %621 = vmatprep.mubr.f32.mxu0 %v258
  %622 = vmatmul.mubr.f32.gmra.mxu0 %v60
  %v623 = vpop.f32.mrf.mxu0
  %v624 = vadd.f32 0.0, %v623
  %v625 = vpop.f32.mrf.mxu0
  %626 = vmatprep.mubr.f32.mxu0 %v261
  %627 = vmatmul.mubr.f32.gmra.mxu0 %v62
  %v628 = vpop.f32.mrf.mxu0
  %v629 = vadd.f32 0.0, %v628
  %v630 = vpop.f32.mrf.mxu0
  %631 = vmatprep.mubr.f32.mxu0 %v264
  %632 = vmatmul.mubr.f32.gmra.mxu0 %v64
  %v633 = vpop.f32.mrf.mxu0
  %v634 = vadd.f32 0.0, %v633
  %v635 = vpop.f32.mrf.mxu0
  %636 = vmatprep.mubr.f32.mxu0 %v267
  %637 = vmatmul.mubr.f32.gmra.mxu0 %v66
  %v638 = vpop.f32.mrf.mxu0
  %v639 = vadd.f32 0.0, %v638
  %v640 = vpop.f32.mrf.mxu0
  %641 = vmatprep.mubr.f32.mxu0 %v270
  %642 = vmatmul.mubr.f32.gmra.mxu0 %v68
  %v643 = vpop.f32.mrf.mxu0
  %v644 = vadd.f32 0.0, %v643
  %v645 = vpop.f32.mrf.mxu0
  %646 = vmatprep.mubr.f32.mxu0 %v273
  %647 = vmatmul.mubr.f32.gmra.mxu0 %v70
  %v648 = vpop.f32.mrf.mxu0
  %v649 = vadd.f32 0.0, %v648
  %v650 = vpop.f32.mrf.mxu0
  %651 = vmatprep.mubr.f32.mxu0 %v276
  %652 = vmatmul.mubr.f32.gmra.mxu0 %v72
  %v653 = vpop.f32.mrf.mxu0
  %v654 = vadd.f32 0.0, %v653
  %v655 = vpop.f32.mrf.mxu0
  %656 = vmatprep.mubr.f32.mxu0 %v279
  %657 = vmatmul.mubr.f32.gmra.mxu0 %v74
  %v658 = vpop.f32.mrf.mxu0
  %v659 = vadd.f32 0.0, %v658
  %v660 = vpop.f32.mrf.mxu0
  %661 = vmatprep.mubr.f32.mxu0 %v282
  %662 = vmatmul.mubr.f32.gmra.mxu0 %v76
  %v663 = vpop.f32.mrf.mxu0
  %v664 = vadd.f32 0.0, %v663
  %v665 = vpop.f32.mrf.mxu0
  %666 = vmatprep.mubr.f32.mxu0 %v285
  %667 = vmatmul.mubr.f32.gmra.mxu0 %v78
  %v668 = vpop.f32.mrf.mxu0
  %v669 = vadd.f32 0.0, %v668
  %v670 = vpop.f32.mrf.mxu0
  %671 = vmatprep.mubr.f32.mxu0 %v288
  %672 = vmatmul.mubr.f32.gmra.mxu0 %v80
  %v673 = vpop.f32.mrf.mxu0
  %v674 = vadd.f32 0.0, %v673
  %v675 = vpop.f32.mrf.mxu0
  %676 = vmatprep.mubr.f32.mxu0 %v291
  %677 = vmatmul.mubr.f32.gmra.mxu0 %v82
  %v678 = vpop.f32.mrf.mxu0
  %v679 = vadd.f32 0.0, %v678
  %v680 = vpop.f32.mrf.mxu0
  %681 = vmatprep.mubr.f32.mxu0 %v294
  %682 = vmatmul.mubr.f32.gmra.mxu0 %v84
  %v683 = vpop.f32.mrf.mxu0
  %v684 = vadd.f32 0.0, %v683
  %v685 = vpop.f32.mrf.mxu0
  %686 = vmatprep.mubr.f32.mxu0 %v297
  %687 = vmatmul.mubr.f32.gmra.mxu0 %v86
  %v688 = vpop.f32.mrf.mxu0
  %v689 = vadd.f32 0.0, %v688
  %v690 = vpop.f32.mrf.mxu0
  %691 = vmatprep.mubr.f32.mxu0 %v300
  %692 = vmatmul.mubr.f32.gmra.mxu0 %v88
  %v693 = vpop.f32.mrf.mxu0
  %v694 = vadd.f32 0.0, %v693
  %v695 = vpop.f32.mrf.mxu0
  %696 = vmatprep.mubr.f32.mxu0 %v303
  %697 = vmatmul.mubr.f32.gmra.mxu0 %v90
  %v698 = vpop.f32.mrf.mxu0
  %v699 = vadd.f32 0.0, %v698
  %v700 = vpop.f32.mrf.mxu0
  %701 = vmatprep.mubr.f32.mxu0 %v306
  %702 = vmatmul.mubr.f32.gmra.mxu0 %v92
  %v703 = vpop.f32.mrf.mxu0
  %v704 = vadd.f32 0.0, %v703
  %v705 = vpop.f32.mrf.mxu0
  %706 = vmatprep.mubr.f32.mxu0 %v309
  %707 = vmatmul.mubr.f32.gmra.mxu0 %v94
  %v708 = vpop.f32.mrf.mxu0
  %v709 = vadd.f32 0.0, %v708
  %v710 = vpop.f32.mrf.mxu0
  %711 = vmatprep.mubr.f32.mxu0 %v312
  %712 = vmatmul.mubr.f32.gmra.mxu0 %v96
  %v713 = vpop.f32.mrf.mxu0
  %v714 = vadd.f32 0.0, %v713
  %v715 = vpop.f32.mrf.mxu0
  %716 = vmatprep.mubr.f32.mxu0 %v315
  %717 = vmatmul.mubr.f32.gmra.mxu0 %v98
  %v718 = vpop.f32.mrf.mxu0
  %v719 = vadd.f32 0.0, %v718
  %v720 = vpop.f32.mrf.mxu0
  %721 = vmatprep.mubr.f32.mxu0 %v318
  %722 = vmatmul.mubr.f32.gmra.mxu0 %v100
  %v723 = vpop.f32.mrf.mxu0
  %v724 = vadd.f32 0.0, %v723
  %v725 = vpop.f32.mrf.mxu0
  %726 = vmatprep.mubr.f32.mxu0 %v321
  %727 = vmatmul.mubr.f32.gmra.mxu0 %v102
  %v728 = vpop.f32.mrf.mxu0
  %v729 = vadd.f32 0.0, %v728
  %v730 = vpop.f32.mrf.mxu0
  %731 = vmatprep.mubr.f32.mxu0 %v324
  %732 = vmatmul.mubr.f32.gmra.mxu0 %v104
  %v733 = vpop.f32.mrf.mxu0
  %v734 = vadd.f32 0.0, %v733
  %v735 = vpop.f32.mrf.mxu0
  %736 = vmatprep.mubr.f32.mxu0 %v327
  %737 = vmatmul.mubr.f32.gmra.mxu0 %v106
  %v738 = vpop.f32.mrf.mxu0
  %v739 = vadd.f32 0.0, %v738
  %v740 = vpop.f32.mrf.mxu0
  %741 = vmatprep.mubr.f32.mxu0 %v330
  %742 = vmatmul.mubr.f32.gmra.mxu0 %v108
  %v743 = vpop.f32.mrf.mxu0
  %v744 = vadd.f32 0.0, %v743
  %v745 = vpop.f32.mrf.mxu0
  %746 = vmatprep.mubr.f32.mxu0 %v333
  %747 = vmatmul.mubr.f32.gmra.mxu0 %v110
  %v748 = vpop.f32.mrf.mxu0
  %v749 = vadd.f32 0.0, %v748
  %v750 = vpop.f32.mrf.mxu0
  %751 = vmatprep.mubr.f32.mxu0 %v336
  %752 = vmatmul.mubr.f32.gmra.mxu0 %v112
  %v753 = vpop.f32.mrf.mxu0
  %v754 = vadd.f32 0.0, %v753
  %v755 = vpop.f32.mrf.mxu0
  %756 = vmatprep.mubr.f32.mxu0 %v339
  %757 = vmatmul.mubr.f32.gmra.mxu0 %v114
  %v758 = vpop.f32.mrf.mxu0
  %v759 = vadd.f32 0.0, %v758
  %v760 = vpop.f32.mrf.mxu0
  %761 = vmatprep.mubr.f32.mxu0 %v342
  %762 = vmatmul.mubr.f32.gmra.mxu0 %v116
  %v763 = vpop.f32.mrf.mxu0
  %v764 = vadd.f32 0.0, %v763
  %v765 = vpop.f32.mrf.mxu0
  %766 = vmatprep.mubr.f32.mxu0 %v345
  %767 = vmatmul.mubr.f32.gmra.mxu0 %v118
  %v768 = vpop.f32.mrf.mxu0
  %v769 = vadd.f32 0.0, %v768
  %v770 = vpop.f32.mrf.mxu0
  %771 = vmatprep.mubr.f32.mxu0 %v348
  %772 = vmatmul.mubr.f32.gmra.mxu0 %v120
  %v773 = vpop.f32.mrf.mxu0
  %v774 = vadd.f32 0.0, %v773
  %v775 = vpop.f32.mrf.mxu0
  %776 = vmatprep.mubr.f32.mxu0 %v351
  %777 = vmatmul.mubr.f32.gmra.mxu0 %v122
  %v778 = vpop.f32.mrf.mxu0
  %v779 = vadd.f32 0.0, %v778
  %v780 = vpop.f32.mrf.mxu0
  %781 = vmatprep.mubr.f32.mxu0 %v354
  %782 = vmatmul.mubr.f32.gmra.mxu0 %v124
  %v783 = vpop.f32.mrf.mxu0
  %v784 = vadd.f32 0.0, %v783
  %v785 = vpop.f32.mrf.mxu0
  %786 = vmatprep.mubr.f32.mxu0 %v357
  %787 = vmatmul.mubr.f32.gmra.mxu0 %v126
  %v788 = vpop.f32.mrf.mxu0
  %v789 = vadd.f32 0.0, %v788
  %v790 = vpop.f32.mrf.mxu0
  %791 = vmatprep.mubr.f32.mxu0 %v360
  %792 = vmatmul.mubr.f32.gmra.mxu0 %v128
  %v793 = vpop.f32.mrf.mxu0
  %v794 = vadd.f32 0.0, %v793
  %v795 = vpop.f32.mrf.mxu0
  %796 = vmatprep.mubr.f32.mxu0 %v363
  %797 = vmatmul.mubr.f32.gmra.mxu0 %v130
  %v798 = vpop.f32.mrf.mxu0
  %v799 = vadd.f32 0.0, %v798
  %v800 = vpop.f32.mrf.mxu0
  %801 = vmatprep.mubr.f32.mxu0 %v366
  %802 = vmatmul.mubr.f32.gmra.mxu0 %v132
  %v803 = vpop.f32.mrf.mxu0
  %v804 = vadd.f32 0.0, %v803
  %v805 = vpop.f32.mrf.mxu0
  %806 = vmatprep.mubr.f32.mxu0 %v369
  %807 = vmatmul.mubr.f32.gmra.mxu0 %v134
  %v808 = vpop.f32.mrf.mxu0
  %v809 = vadd.f32 0.0, %v808
  %v810 = vpop.f32.mrf.mxu0
  %811 = vmatprep.mubr.f32.mxu0 %v372
  %812 = vmatmul.mubr.f32.gmra.mxu0 %v136
  %v813 = vpop.f32.mrf.mxu0
  %v814 = vadd.f32 0.0, %v813
  %v815 = vpop.f32.mrf.mxu0
  %816 = vmatprep.mubr.f32.mxu0 %v375
  %817 = vmatmul.mubr.f32.gmra.mxu0 %v138
  %v818 = vpop.f32.mrf.mxu0
  %v819 = vadd.f32 0.0, %v818
  %v820 = vpop.f32.mrf.mxu0
  %821 = vmatprep.mubr.f32.mxu0 %v378
  %822 = vmatmul.mubr.f32.gmra.mxu0 %v140
  %v823 = vpop.f32.mrf.mxu0
  %v824 = vadd.f32 0.0, %v823
  %v825 = vpop.f32.mrf.mxu0
  %826 = vmatprep.mubr.f32.mxu0 %v381
  %827 = vmatmul.mubr.f32.gmra.mxu0 %v142
  %v828 = vpop.f32.mrf.mxu0
  %v829 = vadd.f32 0.0, %v828
  %v830 = vpop.f32.mrf.mxu0
  %831 = vmatprep.mubr.f32.mxu0 %v384
  %832 = vmatmul.mubr.f32.gmra.mxu0 %v144
  %v833 = vpop.f32.mrf.mxu0
  %v834 = vadd.f32 0.0, %v833
  %v835 = vpop.f32.mrf.mxu0
  %836 = vmatprep.mubr.f32.mxu0 %v387
  %837 = vmatmul.mubr.f32.gmra.mxu0 %v146
  %v838 = vpop.f32.mrf.mxu0
  %v839 = vadd.f32 0.0, %v838
  %v840 = vpop.f32.mrf.mxu0
  %841 = vmatprep.mubr.f32.mxu0 %v390
  %842 = vmatmul.mubr.f32.gmra.mxu0 %v148
  %v843 = vpop.f32.mrf.mxu0
  %v844 = vadd.f32 0.0, %v843
  %v845 = vpop.f32.mrf.mxu0
  %846 = vmatprep.mubr.f32.mxu0 %v393
  %847 = vmatmul.mubr.f32.gmra.mxu0 %v150
  %v848 = vpop.f32.mrf.mxu0
  %v849 = vadd.f32 0.0, %v848
  %v850 = vpop.f32.mrf.mxu0
  %851 = vmatprep.mubr.f32.mxu0 %v396
  %852 = vmatmul.mubr.f32.gmra.mxu0 %v152
  %v853 = vpop.f32.mrf.mxu0
  %v854 = vadd.f32 0.0, %v853
  %v855 = vpop.f32.mrf.mxu0
  %856 = vmatprep.mubr.f32.mxu0 %v399
  %857 = vmatmul.mubr.f32.gmra.mxu0 %v154
  %v858 = vpop.f32.mrf.mxu0
  %v859 = vadd.f32 0.0, %v858
  %v860 = vpop.f32.mrf.mxu0
  %861 = vmatprep.mubr.f32.mxu0 %v402
  %862 = vmatmul.mubr.f32.gmra.mxu0 %v156
  %v863 = vpop.f32.mrf.mxu0
  %v864 = vadd.f32 0.0, %v863
  %v865 = vpop.f32.mrf.mxu0
  %866 = vmatprep.mubr.f32.mxu0 %v405
  %867 = vmatmul.mubr.f32.gmra.mxu0 %v158
  %v868 = vpop.f32.mrf.mxu0
  %v869 = vadd.f32 0.0, %v868
  %v870 = vpop.f32.mrf.mxu0
  %871 = vmatprep.mubr.f32.mxu0 %v408
  %872 = vmatmul.mubr.f32.gmra.mxu0 %v160
  %v873 = vpop.f32.mrf.mxu0
  %v874 = vadd.f32 0.0, %v873
  %v875 = vpop.f32.mrf.mxu0
  %876 = vmatprep.mubr.f32.mxu0 %v411
  %877 = vmatmul.mubr.f32.gmra.mxu0 %v162
  %v878 = vpop.f32.mrf.mxu0
  %v879 = vadd.f32 0.0, %v878
  %v880 = vpop.f32.mrf.mxu0
  %881 = vmatprep.mubr.f32.mxu0 %v414
  %882 = vmatmul.mubr.f32.gmra.mxu0 %v164
  %v883 = vpop.f32.mrf.mxu0
  %v884 = vadd.f32 0.0, %v883
  %v885 = vpop.f32.mrf.mxu0
  %886 = vmatprep.mubr.f32.mxu0 %v417
  %887 = vmatmul.mubr.f32.gmra.mxu0 %v166
  %v888 = vpop.f32.mrf.mxu0
  %v889 = vadd.f32 0.0, %v888
  %v890 = vpop.f32.mrf.mxu0
  %891 = vmatprep.mubr.f32.mxu0 %v420
  %892 = vmatmul.mubr.f32.gmra.mxu0 %v168
  %v893 = vpop.f32.mrf.mxu0
  %v894 = vadd.f32 0.0, %v893
  %v895 = vpop.f32.mrf.mxu0
  %896 = vmatprep.mubr.f32.mxu0 %v423
  %897 = vmatmul.mubr.f32.gmra.mxu0 %v170
  %v898 = vpop.f32.mrf.mxu0
  %v899 = vadd.f32 0.0, %v898
  %v900 = vpop.f32.mrf.mxu0
  %901 = vmatprep.mubr.f32.mxu0 %v426
  %902 = vmatmul.mubr.f32.gmra.mxu0 %v172
  %v903 = vpop.f32.mrf.mxu0
  %v904 = vadd.f32 0.0, %v903
  %v905 = vpop.f32.mrf.mxu0
  %906 = vmatprep.mubr.f32.mxu0 %v429
  %907 = vmatmul.mubr.f32.gmra.mxu0 %v174
  %v908 = vpop.f32.mrf.mxu0
  %v909 = vadd.f32 0.0, %v908
  %v910 = vpop.f32.mrf.mxu0
  %911 = vmatprep.mubr.f32.mxu0 %v432
  %912 = vmatmul.mubr.f32.gmra.mxu0 %v176
  %v913 = vpop.f32.mrf.mxu0
  %v914 = vadd.f32 0.0, %v913
  %v915 = vpop.f32.mrf.mxu0
  %916 = vmatprep.mubr.f32.mxu0 %v435
  %917 = vmatmul.mubr.f32.gmra.mxu0 %v178
  %v918 = vpop.f32.mrf.mxu0
  %v919 = vadd.f32 0.0, %v918
  %v920 = vpop.f32.mrf.mxu0
  %921 = vmatprep.mubr.f32.mxu0 %v438
  %922 = vmatmul.mubr.f32.gmra.mxu0 %v180
  %v923 = vpop.f32.mrf.mxu0
  %v924 = vadd.f32 0.0, %v923
  %v925 = vpop.f32.mrf.mxu0
  %926 = vmatprep.mubr.f32.mxu0 %v441
  %927 = vmatmul.mubr.f32.gmra.mxu0 %v182
  %v928 = vpop.f32.mrf.mxu0
  %v929 = vadd.f32 0.0, %v928
  %v930 = vpop.f32.mrf.mxu0
  %931 = vmatprep.mubr.f32.mxu0 %v444
  %932 = vmatmul.mubr.f32.gmra.mxu0 %v184
  %v933 = vpop.f32.mrf.mxu0
  %v934 = vadd.f32 0.0, %v933
  %v935 = vpop.f32.mrf.mxu0
  %936 = vmatprep.mubr.f32.mxu0 %v447
  %937 = vmatmul.mubr.f32.gmra.mxu0 %v186
  %v938 = vpop.f32.mrf.mxu0
  %v939 = vadd.f32 0.0, %v938
  %v940 = vpop.f32.mrf.mxu0
  %941 = vmatprep.mubr.f32.mxu0 %v450
  %942 = vmatmul.mubr.f32.gmra.mxu0 %v188
  %v943 = vpop.f32.mrf.mxu0
  %v944 = vadd.f32 0.0, %v943
  %v945 = vpop.f32.mrf.mxu0
  %946 = vmatprep.mubr.f32.mxu0 %v453
  %947 = vmatmul.mubr.f32.gmra.mxu0 %v190
  %v948 = vpop.f32.mrf.mxu0
  %v949 = vadd.f32 0.0, %v948
  %v950 = vpop.f32.mrf.mxu0
  %951 = vmatprep.mubr.f32.mxu0 %v456
  %952 = vmatmul.mubr.f32.gmra.mxu0 %v192
  %v953 = vpop.f32.mrf.mxu0
  %v954 = vadd.f32 0.0, %v953
  %v955 = vpop.f32.mrf.mxu0
  %956 = vmatprep.mubr.f32.mxu0 %v459
  %957 = vmatmul.mubr.f32.gmra.mxu0 %v194
  %v958 = vpop.f32.mrf.mxu0
  %v959 = vadd.f32 0.0, %v958
  %v960 = vpop.f32.mrf.mxu0
  %961 = vmatprep.mubr.f32.mxu0 %v462
  %962 = vmatmul.mubr.f32.gmra.mxu0 %v196
  %v963 = vpop.f32.mrf.mxu0
  %v964 = vadd.f32 0.0, %v963
  %v965 = vpop.f32.mrf.mxu0
  %966 = vmatprep.mubr.f32.mxu0 %v465
  %967 = vmatmul.mubr.f32.gmra.mxu0 %v198
  %v968 = vpop.f32.mrf.mxu0
  %v969 = vadd.f32 0.0, %v968
  %v970 = vpop.f32.mrf.mxu0
  %971 = vmatprep.mubr.f32.mxu0 %v468
  %972 = vmatmul.mubr.f32.gmra.mxu0 %v200
  %v973 = vpop.f32.mrf.mxu0
  %v974 = vadd.f32 0.0, %v973
  %v975 = vpop.f32.mrf.mxu0
  %976 = vmatprep.mubr.f32.mxu0 %v471
  %977 = vmatmul.mubr.f32.gmra.mxu0 %v202
  %v978 = vpop.f32.mrf.mxu0
  %v979 = vadd.f32 0.0, %v978
  %v980 = vpop.f32.mrf.mxu0
  %981 = vmatprep.mubr.f32.mxu0 %v474
  %982 = vmatmul.mubr.f32.gmra.mxu0 %v204
  %v983 = vpop.f32.mrf.mxu0
  %v984 = vadd.f32 0.0, %v983
  %v985 = vpop.f32.mrf.mxu0
  %986 = vmatprep.mubr.f32.mxu0 %v477
  %987 = vmatmul.mubr.f32.gmra.mxu0 %v206
  %v988 = vpop.f32.mrf.mxu0
  %v989 = vadd.f32 0.0, %v988
  %v990 = vpop.f32.mrf.mxu0
  %991 = vmatprep.mubr.f32.mxu0 %v480
  %992 = vmatmul.mubr.f32.gmra.mxu0 %v208
  %v993 = vpop.f32.mrf.mxu0
  %v994 = vadd.f32 0.0, %v993
  %v995 = vpop.f32.mrf.mxu0
  %996 = vmatprep.mubr.f32.mxu0 %v483
  %997 = vmatmul.mubr.f32.gmra.mxu0 %v210
  %v998 = vpop.f32.mrf.mxu0
  %v999 = vadd.f32 0.0, %v998
  %v1000 = vpop.f32.mrf.mxu0
  %1001 = vmatprep.mubr.f32.mxu0 %v486
  %1002 = vmatmul.mubr.f32.gmra.mxu0 %v212
  %v1003 = vpop.f32.mrf.mxu0
  %v1004 = vadd.f32 0.0, %v1003
  %v1005 = vpop.f32.mrf.mxu0
  %1006 = vmatprep.mubr.f32.mxu0 %v489
  %1007 = vmatmul.mubr.f32.gmra.mxu0 %v214
  %v1008 = vpop.f32.mrf.mxu0
  %v1009 = vadd.f32 0.0, %v1008
  %v1010 = vpop.f32.mrf.mxu0
  %1011 = vmatprep.mubr.f32.mxu0 %v492
  %1012 = vmatmul.mubr.f32.gmra.mxu0 %v216
  %v1013 = vpop.f32.mrf.mxu0
  %v1014 = vadd.f32 0.0, %v1013
  %v1015 = vpop.f32.mrf.mxu0
  %1016 = vmatprep.mubr.f32.mxu0 %v495
  %1017 = vmatmul.mubr.f32.gmra.mxu0 %v218
  %v1018 = vpop.f32.mrf.mxu0
  %v1019 = vadd.f32 0.0, %v1018
  %v1020 = vpop.f32.mrf.mxu0
  %1021 = vdwg.mxu0
  %v1022 = vmax.f32 %v564, %v679
  %v1023 = vmax.f32 %v569, %v684
  %v1024 = vmax.f32 %v574, %v689
  %v1025 = vmax.f32 %v579, %v694
  %v1026 = vmax.f32 %v584, %v699
  %v1027 = vmax.f32 %v589, %v704
  %v1028 = vmax.f32 %v594, %v709
  %v1029 = vmax.f32 %v599, %v714
  %v1030 = vmax.f32 %v604, %v719
  %v1031 = vmax.f32 %v609, %v724
  %v1032 = vmax.f32 %v614, %v729
  %v1033 = vmax.f32 %v619, %v734
  %v1034 = vmax.f32 %v624, %v739
  %v1035 = vmax.f32 %v629, %v744
  %v1036 = vmax.f32 %v634, %v749
  %v1037 = vmax.f32 %v639, %v754
  %v1038 = vmax.f32 %v644, %v759
  %v1039 = vmax.f32 %v649, %v764
  %v1040 = vmax.f32 %v654, %v769
  %v1041 = vmax.f32 %v659, %v774
  %v1042 = vmax.f32 %v664, %v779
  %v1043 = vmax.f32 %v669, %v784
  %v1044 = vmax.f32 %v674, %v789
  %v1045 = vmax.f32 %v794, %v909
  %v1046 = vmax.f32 %v799, %v914
  %v1047 = vmax.f32 %v804, %v919
  %v1048 = vmax.f32 %v809, %v924
  %v1049 = vmax.f32 %v814, %v929
  %v1050 = vmax.f32 %v819, %v934
  %v1051 = vmax.f32 %v824, %v939
  %v1052 = vmax.f32 %v829, %v944
  %v1053 = vmax.f32 %v834, %v949
  %v1054 = vmax.f32 %v839, %v954
  %v1055 = vmax.f32 %v844, %v959
  %v1056 = vmax.f32 %v849, %v964
  %v1057 = vmax.f32 %v854, %v969
  %v1058 = vmax.f32 %v859, %v974
  %v1059 = vmax.f32 %v864, %v979
  %v1060 = vmax.f32 %v869, %v984
  %v1061 = vmax.f32 %v874, %v989
  %v1062 = vmax.f32 %v879, %v994
  %v1063 = vmax.f32 %v884, %v999
  %v1064 = vmax.f32 %v889, %v1004
  %v1065 = vmax.f32 %v894, %v1009
  %v1066 = vmax.f32 %v899, %v1014
  %v1067 = vmax.f32 %v904, %v1019
  %v1068 = vmax.f32 %v1022, %v1045
  %v1069 = vmax.f32 %v1023, %v1046
  %v1070 = vmax.f32 %v1024, %v1047
  %v1071 = vmax.f32 %v1025, %v1048
  %v1072 = vmax.f32 %v1026, %v1049
  %v1073 = vmax.f32 %v1027, %v1050
  %v1074 = vmax.f32 %v1028, %v1051
  %v1075 = vmax.f32 %v1029, %v1052
  %v1076 = vmax.f32 %v1030, %v1053
  %v1077 = vmax.f32 %v1031, %v1054
  %v1078 = vmax.f32 %v1032, %v1055
  %v1079 = vmax.f32 %v1033, %v1056
  %v1080 = vmax.f32 %v1034, %v1057
  %v1081 = vmax.f32 %v1035, %v1058
  %v1082 = vmax.f32 %v1036, %v1059
  %v1083 = vmax.f32 %v1037, %v1060
  %v1084 = vmax.f32 %v1038, %v1061
  %v1085 = vmax.f32 %v1039, %v1062
  %v1086 = vmax.f32 %v1040, %v1063
  %v1087 = vmax.f32 %v1041, %v1064
  %v1088 = vmax.f32 %v1042, %v1065
  %v1089 = vmax.f32 %v1043, %v1066
  %v1090 = vmax.f32 %v1044, %v1067
  %v1091 = vmax.f32 %v1068, 0.0
  %v1092 = vmax.f32 %v1069, 0.0
  %v1093 = vmax.f32 %v1070, 0.0
  %v1094 = vmax.f32 %v1071, 0.0
  %v1095 = vmax.f32 %v1072, 0.0
  %v1096 = vmax.f32 %v1073, 0.0
  %v1097 = vmax.f32 %v1074, 0.0
  %v1098 = vmax.f32 %v1075, 0.0
  %v1099 = vmax.f32 %v1076, 0.0
  %v1100 = vmax.f32 %v1077, 0.0
  %v1101 = vmax.f32 %v1078, 0.0
  %v1102 = vmax.f32 %v1079, 0.0
  %v1103 = vmax.f32 %v1080, 0.0
  %v1104 = vmax.f32 %v1081, 0.0
  %v1105 = vmax.f32 %v1082, 0.0
  %v1106 = vmax.f32 %v1083, 0.0
  %v1107 = vmax.f32 %v1084, 0.0
  %v1108 = vmax.f32 %v1085, 0.0
  %v1109 = vmax.f32 %v1086, 0.0
  %v1110 = vmax.f32 %v1087, 0.0
  %v1111 = vmax.f32 %v1088, 0.0
  %v1112 = vmax.f32 %v1089, 0.0
  %v1113 = vmax.f32 %v1090, 0.0
  %v1114 = vld [vmem:[%s2] sm:$0xff]
  %v1115 = vld [vmem:[%s2 + $0x8] sm:$0xff]
  %v1116 = vld [vmem:[%s2 + $0x10] sm:$0xff]
  %v1117 = vld [vmem:[%s2 + $0x18] sm:$0xff]
  %v1118 = vld [vmem:[%s2 + $0x20] sm:$0xff]
  %v1119 = vld [vmem:[%s2 + $0x28] sm:$0xff]
  %v1120 = vld [vmem:[%s2 + $0x30] sm:$0xff]
  %v1121 = vld [vmem:[%s2 + $0x38] sm:$0xff]
  %v1122 = vld [vmem:[%s2 + $0x40] sm:$0xff]
  %v1123 = vld [vmem:[%s2 + $0x48] sm:$0xff]
  %v1124 = vld [vmem:[%s2 + $0x50] sm:$0xff]
  %v1125 = vld [vmem:[%s2 + $0x58] sm:$0xff]
  %vm1126 = vcmask 457728
  %v1128 = vsel %vm1126, %v1115, 0
  %v1131 = vsel %vm1126, %v1117, 0
  %v1134 = vsel %vm1126, %v1119, 0
  %v1137 = vsel %vm1126, %v1121, 0
  %v1140 = vsel %vm1126, %v1123, 0
  %v1143 = vsel %vm1126, %v1125, 0
  %1145 = vmatprep.subr.mxu0 0.0
  %1146 = vmatpush1.msra.mxu0 %v1106
  %1147 = vmatprep.subr.mxu0 0.0
  %1148 = vmatpush1.msra.mxu0 %v1105
  %1149 = vmatprep.subr.mxu0 0.0
  %1150 = vmatpush1.msra.mxu0 %v1104
  %1151 = vmatprep.subr.mxu0 0.0
  %1152 = vmatpush1.msra.mxu0 %v1103
  %1153 = vmatprep.subr.mxu0 0.0
  %1154 = vmatpush1.msra.mxu0 %v1102
  %1155 = vmatprep.subr.mxu0 0.0
  %1156 = vmatpush1.msra.mxu0 %v1101
  %1157 = vmatprep.subr.mxu0 0.0
  %1158 = vmatpush1.msra.mxu0 %v1100
  %1159 = vmatprep.subr.mxu0 0.0
  %1160 = vmatpush1.msra.mxu0 %v1099
  %1161 = vmatprep.subr.mxu0 0.0
  %1162 = vmatpush1.msra.mxu0 %v1098
  %1163 = vmatprep.subr.mxu0 0.0
  %1164 = vmatpush1.msra.mxu0 %v1097
  %1165 = vmatprep.subr.mxu0 0.0
  %1166 = vmatpush1.msra.mxu0 %v1096
  %1167 = vmatprep.subr.mxu0 0.0
  %1168 = vmatpush1.msra.mxu0 %v1095
  %1169 = vmatprep.subr.mxu0 0.0
  %1170 = vmatpush1.msra.mxu0 %v1094
  %1171 = vmatprep.subr.mxu0 0.0
  %1172 = vmatpush1.msra.mxu0 %v1093
  %1173 = vmatprep.subr.mxu0 0.0
  %1174 = vmatpush1.msra.mxu0 %v1092
  %1175 = vmatprep.subr.mxu0 0.0
  %1176 = vmatpush1.msra.mxu0 %v1091
  %1177 = vmatprep.subr.mxu0 0.0
  %1178 = vmatpush2.msra.mxu0 0.0
  %1179 = vmatprep.subr.mxu0 0.0
  %1180 = vmatpush2.msra.mxu0 0.0
  %1181 = vmatprep.subr.mxu0 0.0
  %1182 = vmatpush2.msra.mxu0 0.0
  %1183 = vmatprep.subr.mxu0 0.0
  %1184 = vmatpush2.msra.mxu0 0.0
  %1185 = vmatprep.subr.mxu0 0.0
  %1186 = vmatpush2.msra.mxu0 0.0
  %1187 = vmatprep.subr.mxu0 0.0
  %1188 = vmatpush2.msra.mxu0 0.0
  %1189 = vmatprep.subr.mxu0 0.0
  %1190 = vmatpush2.msra.mxu0 0.0
  %1191 = vmatprep.subr.mxu0 0.0
  %1192 = vmatpush2.msra.mxu0 0.0
  %1193 = vmatprep.subr.mxu0 0.0
  %1194 = vmatpush2.msra.mxu0 0.0
  %1195 = vmatprep.subr.mxu0 0.0
  %1196 = vmatpush2.msra.mxu0 %v1113
  %1197 = vmatprep.subr.mxu0 0.0
  %1198 = vmatpush2.msra.mxu0 %v1112
  %1199 = vmatprep.subr.mxu0 0.0
  %1200 = vmatpush2.msra.mxu0 %v1111
  %1201 = vmatprep.subr.mxu0 0.0
  %1202 = vmatpush2.msra.mxu0 %v1110
  %1203 = vmatprep.subr.mxu0 0.0
  %1204 = vmatpush2.msra.mxu0 %v1109
  %1205 = vmatprep.subr.mxu0 0.0
  %1206 = vmatpush2.msra.mxu0 %v1108
  %1207 = vmatprep.subr.mxu0 0.0
  %1208 = vmatpush2.msra.mxu0 %v1107
  %1209 = vmatprep.mubr.f32.mxu0 %v1128
  %1210 = vmatmul.mubr.f32.gmra.mxu0 %v1114
  %v1211 = vpop.f32.mrf.mxu0
  %v1212 = vadd.f32 0.0, %v1211
  %v1213 = vpop.f32.mrf.mxu0
  %1214 = vmatprep.mubr.f32.mxu0 %v1131
  %1215 = vmatmul.mubr.f32.gmra.mxu0 %v1116
  %v1216 = vpop.f32.mrf.mxu0
  %v1217 = vadd.f32 0.0, %v1216
  %v1218 = vpop.f32.mrf.mxu0
  %1219 = vmatprep.mubr.f32.mxu0 %v1134
  %1220 = vmatmul.mubr.f32.gmra.mxu0 %v1118
  %v1221 = vpop.f32.mrf.mxu0
  %v1222 = vadd.f32 0.0, %v1221
  %v1223 = vpop.f32.mrf.mxu0
  %1224 = vmatprep.mubr.f32.mxu0 %v1137
  %1225 = vmatmul.mubr.f32.gmra.mxu0 %v1120
  %v1226 = vpop.f32.mrf.mxu0
  %v1227 = vadd.f32 0.0, %v1226
  %v1228 = vpop.f32.mrf.mxu0
  %1229 = vmatprep.mubr.f32.mxu0 %v1140
  %1230 = vmatmul.mubr.f32.gmra.mxu0 %v1122
  %v1231 = vpop.f32.mrf.mxu0
  %v1232 = vadd.f32 0.0, %v1231
  %v1233 = vpop.f32.mrf.mxu0
  %1234 = vmatprep.mubr.f32.mxu0 %v1143
  %1235 = vmatmul.mubr.f32.gmra.mxu0 %v1124
  %v1236 = vpop.f32.mrf.mxu0
  %v1237 = vadd.f32 0.0, %v1236
  %v1238 = vpop.f32.mrf.mxu0
  %1239 = vdwg.mxu0
  %v1240 = vmax.f32 %v1212, 0.0
  %v1241 = vmax.f32 %v1217, 0.0
  %v1242 = vmax.f32 %v1222, 0.0
  %v1243 = vmax.f32 %v1227, 0.0
  %v1244 = vmax.f32 %v1232, 0.0
  %v1245 = vmax.f32 %v1237, 0.0
  %v1246 = vld [vmem:[%s3] sm:$0x1f]
  %vm1247 = vcmask 392192
  %v1249 = vsel %vm1247, %v1246, 0
  %1251 = vmatprep.subr.mxu0 0.0
  %1252 = vmatpush1.msra.mxu0 0.0
  %1253 = vmatprep.subr.mxu0 0.0
  %1254 = vmatpush1.msra.mxu0 0.0
  %1255 = vmatprep.subr.mxu0 0.0
  %1256 = vmatpush1.msra.mxu0 0.0
  %1257 = vmatprep.subr.mxu0 0.0
  %1258 = vmatpush1.msra.mxu0 0.0
  %1259 = vmatprep.subr.mxu0 0.0
  %1260 = vmatpush1.msra.mxu0 0.0
  %1261 = vmatprep.subr.mxu0 0.0
  %1262 = vmatpush1.msra.mxu0 0.0
  %1263 = vmatprep.subr.mxu0 0.0
  %1264 = vmatpush1.msra.mxu0 0.0
  %1265 = vmatprep.subr.mxu0 0.0
  %1266 = vmatpush1.msra.mxu0 0.0
  %1267 = vmatprep.subr.mxu0 0.0
  %1268 = vmatpush1.msra.mxu0 0.0
  %1269 = vmatprep.subr.mxu0 0.0
  %1270 = vmatpush1.msra.mxu0 0.0
  %1271 = vmatprep.subr.mxu0 0.0
  %1272 = vmatpush1.msra.mxu0 %v1245
  %1273 = vmatprep.subr.mxu0 0.0
  %1274 = vmatpush1.msra.mxu0 %v1244
  %1275 = vmatprep.subr.mxu0 0.0
  %1276 = vmatpush1.msra.mxu0 %v1243
  %1277 = vmatprep.subr.mxu0 0.0
  %1278 = vmatpush1.msra.mxu0 %v1242
  %1279 = vmatprep.subr.mxu0 0.0
  %1280 = vmatpush1.msra.mxu0 %v1241
  %1281 = vmatprep.subr.mxu0 0.0
  %1282 = vmatpush1.msra.mxu0 %v1240
  %1283 = vmatprep.subr.mxu0 0.0
  %1284 = vmatpush2.msra.mxu0 0.0
  %1285 = vmatprep.subr.mxu0 0.0
  %1286 = vmatpush2.msra.mxu0 0.0
  %1287 = vmatprep.subr.mxu0 0.0
  %1288 = vmatpush2.msra.mxu0 0.0
  %1289 = vmatprep.subr.mxu0 0.0
  %1290 = vmatpush2.msra.mxu0 0.0
  %1291 = vmatprep.subr.mxu0 0.0
  %1292 = vmatpush2.msra.mxu0 0.0
  %1293 = vmatprep.subr.mxu0 0.0
  %1294 = vmatpush2.msra.mxu0 0.0
  %1295 = vmatprep.subr.mxu0 0.0
  %1296 = vmatpush2.msra.mxu0 0.0
  %1297 = vmatprep.subr.mxu0 0.0
  %1298 = vmatpush2.msra.mxu0 0.0
  %1299 = vmatprep.subr.mxu0 0.0
  %1300 = vmatpush2.msra.mxu0 0.0
  %1301 = vmatprep.subr.mxu0 0.0
  %1302 = vmatpush2.msra.mxu0 0.0
  %1303 = vmatprep.subr.mxu0 0.0
  %1304 = vmatpush2.msra.mxu0 0.0
  %1305 = vmatprep.subr.mxu0 0.0
  %1306 = vmatpush2.msra.mxu0 0.0
  %1307 = vmatprep.subr.mxu0 0.0
  %1308 = vmatpush2.msra.mxu0 0.0
  %1309 = vmatprep.subr.mxu0 0.0
  %1310 = vmatpush2.msra.mxu0 0.0
  %1311 = vmatprep.subr.mxu0 0.0
  %1312 = vmatpush2.msra.mxu0 0.0
  %1313 = vmatprep.subr.mxu0 0.0
  %1314 = vmatpush2.msra.mxu0 0.0
  %1315 = vmatprep.mubr.f32.mxu0 0.0
  %1316 = vmatmul.mubr.f32.gmra.mxu0 %v1249
  %v1317 = vpop.f32.mrf.mxu0
  %v1318 = vadd.f32 0.0, %v1317
  %v1319 = vpop.f32.mrf.mxu0
  %1320 = vdwg.mxu0
  %vm1321 = vcmask 1044480
  %v1322 = vsel %vm1321, %v1318, -inf
  %v1323 = vrot.slane %v1322, 4
  %v1324 = vmax.f32 %v1322, %v1323
  %v1325 = vrot.slane %v1324, 2
  %v1326 = vmax.f32 %v1324, %v1325
  %v1327 = vrot.slane %v1326, 1
  %v1328 = vmax.f32 %v1326, %v1327
  %v1329 = vsub.f32 %v1318, %v1328
  %v1330 = vmul.f32 %v1329, 1.442695
  %v1331 = vpow.pop %v1330
  %v1332 = vsel %vm1321, %v1331, 0.0
  %v1333 = vrot.slane %v1332, 4
  %v1334 = vadd.f32 %v1332, %v1333
  %v1335 = vrot.slane %v1334, 2
  %v1336 = vadd.f32 %v1334, %v1335
  %v1337 = vrot.slane %v1336, 1
  %v1338 = vadd.f32 %v1336, %v1337
  %v1339 = vlog2.pop %v1338
  %v1340 = vmul.f32 %v1339, 0.6931472
  %v1341 = vsub.f32 %v1329, %v1340
  %1342 = vst [vmem:[%s4] sm:$0x1f] %v1341
  // Predicated region
  $region18: #{cnn_forward.1} parent=0 // pred_check
    _
  $region19: #{cnn_forward.1} parent=0 // pred_check_branch
    %1344 = sbr.rel (0) target = $region21
  $region20: #{cnn_forward.1} parent=0 // pred_region
    _
  $region21: #{cnn_forward.1} parent=0 // pred_fallthru
    _
  // Predicated region
  $region22: #{cnn_forward.1} parent=0 // pred_check
    _
  $region23: #{cnn_forward.1} parent=0 // pred_check_branch
    %1346 = sbr.rel (0) target = $region25
  $region24: #{cnn_forward.1} parent=0 // pred_region
    _
  $region25: #{cnn_forward.1} parent=0 // pred_fallthru
    _

</llo_original>
